<compile_context>
chip_gen: v5e
topology: v5e:2x2
jax: 0.10.0
libtpu: 0.0.40
codegen_flags: <defaults>
</compile_context>

<pallas_src>
import jax
import jax.numpy as jnp
from jax.experimental import pallas as pl
from jax.experimental.pallas import tpu as pltpu


def _round_up(a, b):
    return (a + b - 1) // b * b


def _pick_h_tile(H, preferred):
    """Largest divisor of H that is <= preferred and a multiple of 128, else H."""
    t = min(preferred, H)
    t = (t // 128) * 128
    while t >= 128:
        if H % t == 0:
            return t
        t -= 128
    return H


def _pick_m_tile(M, tm_pref, row_align):
    """Prefer tm_pref, but keep >= 2 M tiles when M permits (v7x has 2 TCs)."""
    half = max((M + 1) // 2, row_align)
    t = min(tm_pref, half)
    return _round_up(max(t, row_align), row_align)


_VMEM_LIMIT_CACHE = None


def _vmem_limit_bytes():
    """~85% of this chip's physical VMEM (v7x ~54 MiB, v5e/v6e ~109 MiB)."""
    global _VMEM_LIMIT_CACHE
    if _VMEM_LIMIT_CACHE is None:
        cap = 64 * 1024 * 1024            # conservative default == v7x physical
        try:
            cap = int(pltpu.get_tpu_info().vmem_capacity_bytes)
        except Exception:
            pass
        _VMEM_LIMIT_CACHE = int(cap * 0.85)   # headroom for compiler scratch
    return _VMEM_LIMIT_CACHE


# ---------------------------------------------------------------------------
# Kernels.  grid = (M tiles, H tiles); axis 1 is the reduction over hidden blocks.
# ---------------------------------------------------------------------------

def _ffn_kernel_f32out(x_ref, wg_ref, wu_ref, wd_ref, bg_ref, bu_ref, bd_ref, o_ref):
    """f32 output: accumulate partial down-proj directly into the resident o_ref."""
    k = pl.program_id(1)
    x = x_ref[...]
    gate = jnp.dot(x, wg_ref[...], preferred_element_type=jnp.float32) + bg_ref[...]
    up = jnp.dot(x, wu_ref[...], preferred_element_type=jnp.float32) + bu_ref[...]
    h = (gate * jax.nn.sigmoid(gate)) * up                  # SiLU in f32 on VPU
    part = jnp.dot(h.astype(wd_ref.dtype), wd_ref[...],
                   preferred_element_type=jnp.float32)

    @pl.when(k == 0)
    def _():
        o_ref[...] = bd_ref[...] + part

    @pl.when(k != 0)
    def _():
        o_ref[...] = o_ref[...] + part


def _ffn_kernel_scratch(x_ref, wg_ref, wu_ref, wd_ref, bg_ref, bu_ref, bd_ref,
                        o_ref, acc_ref):
    """Non-f32 output: f32 VMEM accumulator, cast once in the finalize."""
    k = pl.program_id(1)

    @pl.when(k == 0)
    def _():
        acc_ref[...] = jnp.zeros_like(acc_ref)

    x = x_ref[...]
    gate = jnp.dot(x, wg_ref[...], preferred_element_type=jnp.float32) + bg_ref[...]
    up = jnp.dot(x, wu_ref[...], preferred_element_type=jnp.float32) + bu_ref[...]
    h = (gate * jax.nn.sigmoid(gate)) * up
    acc_ref[...] += jnp.dot(h.astype(wd_ref.dtype), wd_ref[...],
                            preferred_element_type=jnp.float32)

    @pl.when(k == pl.num_programs(1) - 1)
    def _():
        o_ref[...] = (acc_ref[...] + bd_ref[...]).astype(o_ref.dtype)


# ---------------------------------------------------------------------------
# Host-side wrappers.
# ---------------------------------------------------------------------------

def prepare_ffn_params(w_gate, w_up, w_down, b_gate, b_up, b_down, *,
                       matmul_dtype=None):
    """One-time weight prep (pad E to a lane multiple, cast matmul operands).

    Call once at parameter-load time, NOT per forward step -- re-materializing
    weights in HBM every call can cost more bandwidth than the FFN itself.

    w_gate, w_up: (E, H)   w_down: (H, E)   ((in, out) layout, transposed vs torch)
    b_gate, b_up: (H,)     b_down: (E,)
    matmul_dtype: e.g. jnp.bfloat16 (recommended on v5e/v6e/v7x MXUs);
                  accumulation and SiLU remain f32 inside the kernel.
    """
    E, H = w_gate.shape
    E_pad = _round_up(E, 128)                 # lane-dense stores & full MXU K dim
    wdt = matmul_dtype if matmul_dtype is not None else w_gate.dtype

    def pad_rows(w):                          # (E, H) -> (E_pad, H)
        return jnp.pad(w, ((0, E_pad - E), (0, 0))) if E_pad != E else w

    def pad_cols(w):                          # (H, E) -> (H, E_pad)
        return jnp.pad(w, ((0, 0), (0, E_pad - E))) if E_pad != E else w

    bd = jnp.pad(b_down, (0, E_pad - E)) if E_pad != E else b_down
    return dict(
        wg=pad_rows(w_gate).astype(wdt),
        wu=pad_rows(w_up).astype(wdt),
        wd=pad_cols(w_down).astype(wdt),
        bg=b_gate.reshape(1, H).astype(jnp.float32),
        bu=b_up.reshape(1, H).astype(jnp.float32),
        bd=bd.reshape(1, E_pad).astype(jnp.float32),
        E=E, E_pad=E_pad, H=H, matmul_dtype=matmul_dtype,
    )


def ffn_pallas_prepared(x, params, *, tm=512, th=512):
    """SwiGLU FFN forward with pre-prepared params.  x: (B, T, E) -> (B, T, E)."""
    B, T, E = x.shape
    assert E == params["E"], "x embedding dim does not match prepared params"
    E_pad, H = params["E_pad"], params["H"]
    out_dtype = x.dtype
    M = B * T

    mm_dtype = params["matmul_dtype"]
    x_dtype = jnp.dtype(mm_dtype) if mm_dtype is not None else jnp.dtype(x.dtype)
    w_b = jnp.dtype(params["wg"].dtype).itemsize
    x_b = x_dtype.itemsize
    out_b = jnp.dtype(out_dtype).itemsize
    use_scratch = jnp.dtype(out_dtype) != jnp.dtype(jnp.float32)
    row_align = 16 if x_b < 4 else 8

    # ---- tile selection ----------------------------------------------------
    # th only sets the per-step weight-buffer size (no effect on arithmetic
    # intensity); tm sets FLOPs per re-streamed weight byte -> spend VMEM on tm.
    th_eff = _pick_h_tile(H, th)
    nk = H // th_eff

    budget = int(_vmem_limit_bytes() * 0.9)            # margin inside the limit
    weight_step = 2 * (3 * E_pad * th_eff) * w_b       # gate+up+down, double-buffered
    bias_step = 2 * (2 * th_eff + E_pad) * 4
    per_row = E_pad * (2 * x_b + 2 * out_b + (4 if use_scratch else 0))
    tm_cap = (budget - weight_step - bias_step) // per_row
    tm_cap = max(row_align, (tm_cap // row_align) * row_align)
    tm_eff = min(_pick_m_tile(M, tm, row_align), tm_cap)

    M_pad = _round_up(M, tm_eff)
    grid = (M_pad // tm_eff, nk)

    # ---- activation prep (cheap, per-call) ----------------------------------
    x2d = x.reshape(M, E)
    if E_pad != E:
        x2d = jnp.pad(x2d, ((0, 0), (0, E_pad - E)))
    if M_pad != M:
        x2d = jnp.pad(x2d, ((0, M_pad - M), (0, 0)))
    if mm_dtype is not None:
        x2d = x2d.astype(mm_dtype)

    # ---- cost estimate (weights are re-streamed once per M tile) ------------
    w_bytes = ((params["wg"].size + params["wu"].size + params["wd"].size) * w_b
               + (params["bg"].size + params["bu"].size + params["bd"].size) * 4)
    cost = pl.CostEstimate(
        flops=6 * M_pad * E_pad * H,
        transcendentals=M_pad * H,
        bytes_accessed=int(x2d.size * x2d.dtype.itemsize
                           + grid[0] * w_bytes
                           + M_pad * E_pad * out_b),
    )

    kernel = _ffn_kernel_scratch if use_scratch else _ffn_kernel_f32out
    scratch = [pltpu.VMEM((tm_eff, E_pad), jnp.float32)] if use_scratch else []

    out2d = pl.pallas_call(
        kernel,
        out_shape=jax.ShapeDtypeStruct((M_pad, E_pad), out_dtype),
        grid_spec=pltpu.PrefetchScalarGridSpec(
            num_scalar_prefetch=0,
            grid=grid,
            in_specs=[
                pl.BlockSpec((tm_eff, E_pad), lambda i, k: (i, 0)),    # x tile
                pl.BlockSpec((E_pad, th_eff), lambda i, k: (0, k)),    # W_gate tile
                pl.BlockSpec((E_pad, th_eff), lambda i, k: (0, k)),    # W_up tile
                pl.BlockSpec((th_eff, E_pad), lambda i, k: (k, 0)),    # W_down tile
                pl.BlockSpec((1, th_eff), lambda i, k: (0, k)),        # b_gate
                pl.BlockSpec((1, th_eff), lambda i, k: (0, k)),        # b_up
                pl.BlockSpec((1, E_pad), lambda i, k: (0, 0)),         # b_down
            ],
            out_specs=pl.BlockSpec((tm_eff, E_pad), lambda i, k: (i, 0)),
            scratch_shapes=scratch,
        ),
        compiler_params=pltpu.CompilerParams(
            dimension_semantics=("parallel", "arbitrary"),
            vmem_limit_bytes=_vmem_limit_bytes(),
        ),
        cost_estimate=cost,
    )(x2d, params["wg"], params["wu"], params["wd"],
      params["bg"], params["bu"], params["bd"])

    out2d = out2d[:M, :E]
    return out2d.reshape(B, T, E)


def ffn_pallas(x, w_gate, w_up, w_down, b_gate, b_up, b_down, *,
               tm=512, th=512, matmul_dtype=None):
    """Convenience wrapper (preps params every call). Prefer prepare_ffn_params()
    once at parameter load + ffn_pallas_prepared() in the hot path."""
    params = prepare_ffn_params(w_gate, w_up, w_down, b_gate, b_up, b_down,
                                matmul_dtype=matmul_dtype)
    return ffn_pallas_prepared(x, params, tm=tm, th=th)


def ffn_reference(x, w_gate, w_up, w_down, b_gate, b_up, b_down):
    gate = x @ w_gate + b_gate
    up = x @ w_up + b_up
    return (gate * jax.nn.sigmoid(gate) * up) @ w_down + b_down


if __name__ == "__main__":
    # Matches FFN(config) with n_embd=32, n_hidden=64, bias=True, dtype=float32.
    B, T, E, H = 2, 8, 32, 64
    key = jax.random.PRNGKey(0)
    kx, kg, ku, kd, kbg, kbu, kbd = jax.random.split(key, 7)

    x = jax.random.normal(kx, (B, T, E), dtype=jnp.float32)
    # (in, out) layout; scale ~ nn.Linear default magnitude
    w_gate = jax.random.normal(kg, (E, H), dtype=jnp.float32) * (1.0 / E ** 0.5)
    w_up = jax.random.normal(ku, (E, H), dtype=jnp.float32) * (1.0 / E ** 0.5)
    w_down = jax.random.normal(kd, (H, E), dtype=jnp.float32) * (1.0 / H ** 0.5)
    b_gate = jax.random.normal(kbg, (H,), dtype=jnp.float32) * 0.01
    b_up = jax.random.normal(kbu, (H,), dtype=jnp.float32) * 0.01
    b_down = jax.random.normal(kbd, (E,), dtype=jnp.float32) * 0.01

    ref = ffn_reference(x, w_gate, w_up, w_down, b_gate, b_up, b_down)

    # --- f32 path (matches the PyTorch module's default dtype) — tight check.
    params_f32 = prepare_ffn_params(w_gate, w_up, w_down, b_gate, b_up, b_down)
    out = jax.block_until_ready(ffn_pallas_prepared(x, params_f32))
    assert out.shape == (B, T, E)
    assert jnp.allclose(out, ref, atol=1e-4, rtol=1e-4), "f32 mismatch vs reference"

    # --- bf16 matmul operands (MXU-native on v5e/v6e/v7x), f32 accumulation/output.
    params_bf16 = prepare_ffn_params(w_gate, w_up, w_down, b_gate, b_up, b_down,
                                     matmul_dtype=jnp.bfloat16)
    out_bf = jax.block_until_ready(ffn_pallas_prepared(x, params_bf16))
    assert jnp.allclose(out_bf, ref, atol=1e-1, rtol=1e-1), "bf16-matmul mismatch"

    # --- bf16 activations/output (exercises the scratch-accumulator kernel).
    out_bf_out = jax.block_until_ready(
        ffn_pallas_prepared(x.astype(jnp.bfloat16), params_bf16))
    assert out_bf_out.dtype == jnp.bfloat16
    assert jnp.allclose(out_bf_out.astype(jnp.float32), ref, atol=1e-1, rtol=1e-1), \
        "bf16-output mismatch vs reference"

    print("KERNEL_OK")
</pallas_src>

<mosaic_0001>
module attributes {stable_mosaic.version = 11 : i64} {
  func.func @_ffn_kernel_f32out(%arg0: i32, %arg1: i32, %arg2: memref<8x128xf32, #tpu.memory_space<vmem>>, %arg3: memref<128x64xf32, #tpu.memory_space<vmem>>, %arg4: memref<128x64xf32, #tpu.memory_space<vmem>>, %arg5: memref<64x128xf32, #tpu.memory_space<vmem>>, %arg6: memref<1x64xf32, #tpu.memory_space<vmem>>, %arg7: memref<1x64xf32, #tpu.memory_space<vmem>>, %arg8: memref<1x128xf32, #tpu.memory_space<vmem>>, %arg9: memref<8x128xf32, #tpu.memory_space<vmem>>) attributes {dimension_semantics = [#tpu.dimension_semantics<parallel>, #tpu.dimension_semantics<arbitrary>], iteration_bounds = array<i64: 2, 1>, scalar_prefetch = 0 : i64, scratch_operands = 0 : i64, tpu.core_type = #tpu.core_type<tc>, window_params = [{transform_indices = @transform_0, window_bounds = array<i64: 8, 128>}, {transform_indices = @transform_1, window_bounds = array<i64: 128, 64>}, {transform_indices = @transform_2, window_bounds = array<i64: 128, 64>}, {transform_indices = @transform_3, window_bounds = array<i64: 64, 128>}, {transform_indices = @transform_4, window_bounds = array<i64: 1, 64>}, {transform_indices = @transform_5, window_bounds = array<i64: 1, 64>}, {pipeline_mode = #tpu.pipeline_mode<synchronous>, transform_indices = @transform_6, window_bounds = array<i64: 1, 128>}, {transform_indices = @transform_7, window_bounds = array<i64: 8, 128>}]} {
    %c0 = arith.constant 0 : index
    %c0_0 = arith.constant 0 : index
    %0 = vector.load %arg2[%c0, %c0_0] : memref<8x128xf32, #tpu.memory_space<vmem>>, vector<8x128xf32>
    %c0_1 = arith.constant 0 : index
    %c0_2 = arith.constant 0 : index
    %1 = vector.load %arg3[%c0_1, %c0_2] : memref<128x64xf32, #tpu.memory_space<vmem>>, vector<128x64xf32>
    %cst = arith.constant dense<0.000000e+00> : vector<8x64xf32>
    %2 = tpu.matmul %0, %1, %cst {dimension_numbers = #tpu.dot_dimension_numbers<[1], [0], [0], [1], [0, 0, 1, 1], [], []>} : vector<8x128xf32>, vector<128x64xf32>, vector<8x64xf32> -> vector<8x64xf32>
    %c0_3 = arith.constant 0 : index
    %c0_4 = arith.constant 0 : index
    %3 = vector.load %arg6[%c0_3, %c0_4] : memref<1x64xf32, #tpu.memory_space<vmem>>, vector<1x64xf32>
    %4 = vector.broadcast %3 : vector<1x64xf32> to vector<8x64xf32>
    %5 = arith.addf %2, %4 : vector<8x64xf32>
    %c0_5 = arith.constant 0 : index
    %c0_6 = arith.constant 0 : index
    %6 = vector.load %arg4[%c0_5, %c0_6] : memref<128x64xf32, #tpu.memory_space<vmem>>, vector<128x64xf32>
    %cst_7 = arith.constant dense<0.000000e+00> : vector<8x64xf32>
    %7 = tpu.matmul %0, %6, %cst_7 {dimension_numbers = #tpu.dot_dimension_numbers<[1], [0], [0], [1], [0, 0, 1, 1], [], []>} : vector<8x128xf32>, vector<128x64xf32>, vector<8x64xf32> -> vector<8x64xf32>
    %c0_8 = arith.constant 0 : index
    %c0_9 = arith.constant 0 : index
    %8 = vector.load %arg7[%c0_8, %c0_9] : memref<1x64xf32, #tpu.memory_space<vmem>>, vector<1x64xf32>
    %9 = vector.broadcast %8 : vector<1x64xf32> to vector<8x64xf32>
    %10 = arith.addf %7, %9 : vector<8x64xf32>
    %11 = arith.negf %5 : vector<8x64xf32>
    %12 = math.exp %11 : vector<8x64xf32>
    %cst_10 = arith.constant 1.000000e+00 : f32
    %13 = vector.broadcast %cst_10 : f32 to vector<8x64xf32>
    %14 = arith.addf %13, %12 : vector<8x64xf32>
    %15 = arith.divf %13, %14 : vector<8x64xf32>
    %16 = arith.mulf %5, %15 : vector<8x64xf32>
    %17 = arith.mulf %16, %10 : vector<8x64xf32>
    %c0_11 = arith.constant 0 : index
    %c0_12 = arith.constant 0 : index
    %18 = vector.load %arg5[%c0_11, %c0_12] : memref<64x128xf32, #tpu.memory_space<vmem>>, vector<64x128xf32>
    %cst_13 = arith.constant dense<0.000000e+00> : vector<8x128xf32>
    %19 = tpu.matmul %17, %18, %cst_13 {dimension_numbers = #tpu.dot_dimension_numbers<[1], [0], [0], [1], [0, 0, 1, 1], [], []>} : vector<8x64xf32>, vector<64x128xf32>, vector<8x128xf32> -> vector<8x128xf32>
    %c0_i32 = arith.constant 0 : i32
    %20 = arith.cmpi eq, %arg1, %c0_i32 : i32
    %21 = arith.extui %20 : i1 to i32
    %c0_i32_14 = arith.constant 0 : i32
    %22 = arith.cmpi ne, %21, %c0_i32_14 : i32
    scf.if %22 {
      %c0_17 = arith.constant 0 : index
      %c0_18 = arith.constant 0 : index
      %26 = vector.load %arg8[%c0_17, %c0_18] : memref<1x128xf32, #tpu.memory_space<vmem>>, vector<1x128xf32>
      %27 = vector.broadcast %26 : vector<1x128xf32> to vector<8x128xf32>
      %28 = arith.addf %27, %19 : vector<8x128xf32>
      %c0_19 = arith.constant 0 : index
      %c0_20 = arith.constant 0 : index
      %29 = vector.load %arg9[%c0_19, %c0_20] : memref<8x128xf32, #tpu.memory_space<vmem>>, vector<8x128xf32>
      tpu.vector_store %arg9[%c0_19, %c0_20], %28 {strides = array<i32>} : memref<8x128xf32, #tpu.memory_space<vmem>>, vector<8x128xf32>,
    } else {
    }
    %c0_i32_15 = arith.constant 0 : i32
    %23 = arith.cmpi ne, %arg1, %c0_i32_15 : i32
    %24 = arith.extui %23 : i1 to i32
    %c0_i32_16 = arith.constant 0 : i32
    %25 = arith.cmpi ne, %24, %c0_i32_16 : i32
    scf.if %25 {
      %c0_17 = arith.constant 0 : index
      %c0_18 = arith.constant 0 : index
      %26 = vector.load %arg9[%c0_17, %c0_18] : memref<8x128xf32, #tpu.memory_space<vmem>>, vector<8x128xf32>
      %27 = arith.addf %26, %19 : vector<8x128xf32>
      %c0_19 = arith.constant 0 : index
      %c0_20 = arith.constant 0 : index
      %28 = vector.load %arg9[%c0_19, %c0_20] : memref<8x128xf32, #tpu.memory_space<vmem>>, vector<8x128xf32>
      tpu.vector_store %arg9[%c0_19, %c0_20], %27 {strides = array<i32>} : memref<8x128xf32, #tpu.memory_space<vmem>>, vector<8x128xf32>,
    } else {
    }
    return
  }
  func.func @transform_0(%arg0: i32, %arg1: i32) -> (i32, i32) {
    %c0_i32 = arith.constant 0 : i32
    %c0_i32_0 = arith.constant 0 : i32
    return %arg0, %c0_i32 : i32, i32
  }
  func.func @transform_1(%arg0: i32, %arg1: i32) -> (i32, i32) {
    %c0_i32 = arith.constant 0 : i32
    %c0_i32_0 = arith.constant 0 : i32
    return %c0_i32, %arg1 : i32, i32
  }
  func.func @transform_2(%arg0: i32, %arg1: i32) -> (i32, i32) {
    %c0_i32 = arith.constant 0 : i32
    %c0_i32_0 = arith.constant 0 : i32
    return %c0_i32, %arg1 : i32, i32
  }
  func.func @transform_3(%arg0: i32, %arg1: i32) -> (i32, i32) {
    %c0_i32 = arith.constant 0 : i32
    %c0_i32_0 = arith.constant 0 : i32
    return %arg1, %c0_i32 : i32, i32
  }
  func.func @transform_4(%arg0: i32, %arg1: i32) -> (i32, i32) {
    %c0_i32 = arith.constant 0 : i32
    %c0_i32_0 = arith.constant 0 : i32
    return %c0_i32, %arg1 : i32, i32
  }
  func.func @transform_5(%arg0: i32, %arg1: i32) -> (i32, i32) {
    %c0_i32 = arith.constant 0 : i32
    %c0_i32_0 = arith.constant 0 : i32
    return %c0_i32, %arg1 : i32, i32
  }
  func.func @transform_6(%arg0: i32, %arg1: i32) -> (i32, i32) {
    %c0_i32 = arith.constant 0 : i32
    %c0_i32_0 = arith.constant 0 : i32
    %c0_i32_1 = arith.constant 0 : i32
    return %c0_i32, %c0_i32_0 : i32, i32
  }
  func.func @transform_7(%arg0: i32, %arg1: i32) -> (i32, i32) {
    %c0_i32 = arith.constant 0 : i32
    %c0_i32_0 = arith.constant 0 : i32
    return %arg0, %c0_i32 : i32, i32
  }
}

</mosaic_0001>

<llo_original>
// kernel: tpu_custom_call.1
$region0: #{tpu_custom_call.1}
  #allocation0 [shape = 'u32[]', space=smem, size = 0x4, offset = 0x4, fixed_abs, tag = 'smem constant byte address 0x4 - core index']
  #allocation1 [shape = 'u32[72,128]{1,0:T(1,128)}', space=vmem, size = 0x9000, scoped, tag = 'internal scratch']
  %s0 = inlined_call_operand.vmem [shape: f32[16,128], index: 0, kind: input, shape index: {}]
  %s1 = inlined_call_operand.vmem [shape: f32[128,64], index: 1, kind: input, shape index: {}]
  %s2 = inlined_call_operand.vmem [shape: f32[128,64], index: 2, kind: input, shape index: {}]
  %s3 = inlined_call_operand.vmem [shape: f32[64,128], index: 3, kind: input, shape index: {}]
  %s4 = inlined_call_operand.vmem [shape: f32[1,64], index: 4, kind: input, shape index: {}]
  %s5 = inlined_call_operand.vmem [shape: f32[1,64], index: 5, kind: input, shape index: {}]
  %s6 = inlined_call_operand.vmem [shape: f32[1,128], index: 6, kind: input, shape index: {}]
  %s7 = inlined_call_operand.hbm [shape: f32[16,128], index: 7, kind: output, shape index: {}]
  %s8 = sld [smem:[#allocation0]]
  $region69: #{tpu_custom_call.1} parent=0
    _
  %s10 = ssub.s32 1, %s8
  %s11 = scalar_select 0, %s10, %s8
  $region1: #{tpu_custom_call.1} parent=0
    #allocation2 [shape = 'u8[8192]{0}', space=vmem, size = 0x2000, scoped, tag = 'output window, operand 0']
    #allocation3 [shape = 's32[2]{0}', space=sflag, size = 0x8, scoped, tag = 'scoped memory for tpu_custom_call.1']
    %12 = vsyncpa [#allocation3], 0
    %s13 = scalar_lea.sflag [#allocation3], 1
    %14 = vsyncpa %s13, 0
    loop: start=0, step=1, limit=4
    $region2: #{tpu_custom_call.1} parent=1 // loop_pre_header
      _
    $region3: #{tpu_custom_call.1} parent=1 // loop_header
      %s16 = sphi 0, %s20
      %p17 = scmp.ge.s32.totalorder %s16, 4
      %s23 = sphi 0, %s35
      %s24 = sphi 0, %s31
      %s25 = sphi 0, %s23
      %s26 = sphi 0, %s24
      %s27 = sphi 0, %s25
      %s28 = sphi 0, %s26
      %s38 = sphi 0, %s40
      %s41 = sphi 0, %s38
      %s42 = sphi 0, %s41
      %s58 = sphi 0, %s42
      %s64 = sphi 0, %s66
      %s67 = sphi 0, %s64
      %s68 = sphi 0, %s67
      %s84 = sphi 0, %s68
      %s90 = sphi 0, %s92
      %s93 = sphi 0, %s90
      %s94 = sphi 0, %s93
      %s110 = sphi 0, %s94
      %s116 = sphi 0, %s118
      %s119 = sphi 0, %s116
      %s120 = sphi 0, %s119
      %s136 = sphi 0, %s120
      %s142 = sphi 0, %s144
      %s145 = sphi 0, %s142
      %s146 = sphi 0, %s145
      %s162 = sphi 0, %s146
      %s168 = sphi 0, %s170
      %s171 = sphi 0, %s168
      %s172 = sphi 0, %s171
      %s188 = sphi 0, %s172
      %s192 = sphi 0, %s192
      %s194 = sphi 0, %s192
      %s195 = sphi 0, %s194
      %s209 = sphi 0, %s195
      %s215 = sphi 0, %s217
      %s218 = sphi 0, %s215
      %s219 = sphi 0, %s218
      %s235 = sphi 0, %s219
    $region4: #{tpu_custom_call.1} parent=1 // loop_header_branch
      %19 = sbr.rel (%p17) target = $region8
    $region5: #{tpu_custom_call.1} parent=1 // loop_body
      %s21 = ssub.s32 %s16, 1
      %s22 = ssub.s32 %s16, 2
      %s29 = sadd.s32 1, %s24
      %p30 = scmp.ge.s32.totalorder %s29, 1
      %s31 = scalar_select %p30, 0, %s29
      %s32 = sadd.s32 1, %s23
      %s33 = scalar_select %p30, %s32, %s23
      %p34 = scmp.ge.s32.totalorder %s33, 2
      %s35 = scalar_select %p34, 0, %s33
      %s36 = ssub.s32 %s23, %s35
      %p37 = scmp.eq.s32.totalorder %s36, 0
      %s39 = sadd.s32 %s38, 1
      %s40 = scalar_select %p37, %s38, %s39
      %p43 = pneg %p37
      %p44 = scmp.eq.s32.totalorder %s16, 1
      %p45 = por %p43, %p44
      %p46 = scmp.ne.s32.totalorder %s38, %s41
      %p47 = scmp.eq.s32.totalorder %s16, 0
      %p48 = por %p46, %p47
      %p49 = scmp.ne.s32.totalorder %s38, %s41
      %p50 = scmp.eq.s32.totalorder %s21, 1
      %p51 = por %p49, %p50
      %p52 = scmp.ne.s32.totalorder %s41, %s42
      %p53 = scmp.eq.s32.totalorder %s21, 0
      %p54 = por %p52, %p53
      %p55 = scmp.ne.s32.totalorder %s41, %s42
      %p56 = scmp.eq.s32.totalorder %s22, 1
      %p57 = por %p55, %p56
      %p59 = scmp.ne.s32.totalorder %s42, %s58
      %p60 = scmp.eq.s32.totalorder %s22, 0
      %p61 = por %p59, %p60
      %s62 = ssub.s32 %s24, %s31
      %p63 = scmp.eq.s32.totalorder %s62, 0
      %s65 = sadd.s32 %s64, 1
      %s66 = scalar_select %p63, %s64, %s65
      %p69 = pneg %p63
      %p70 = scmp.eq.s32.totalorder %s16, 1
      %p71 = por %p69, %p70
      %p72 = scmp.ne.s32.totalorder %s64, %s67
      %p73 = scmp.eq.s32.totalorder %s16, 0
      %p74 = por %p72, %p73
      %p75 = scmp.ne.s32.totalorder %s64, %s67
      %p76 = scmp.eq.s32.totalorder %s21, 1
      %p77 = por %p75, %p76
      %p78 = scmp.ne.s32.totalorder %s67, %s68
      %p79 = scmp.eq.s32.totalorder %s21, 0
      %p80 = por %p78, %p79
      %p81 = scmp.ne.s32.totalorder %s67, %s68
      %p82 = scmp.eq.s32.totalorder %s22, 1
      %p83 = por %p81, %p82
      %p85 = scmp.ne.s32.totalorder %s68, %s84
      %p86 = scmp.eq.s32.totalorder %s22, 0
      %p87 = por %p85, %p86
      %s88 = ssub.s32 %s24, %s31
      %p89 = scmp.eq.s32.totalorder %s88, 0
      %s91 = sadd.s32 %s90, 1
      %s92 = scalar_select %p89, %s90, %s91
      %p95 = pneg %p89
      %p96 = scmp.eq.s32.totalorder %s16, 1
      %p97 = por %p95, %p96
      %p98 = scmp.ne.s32.totalorder %s90, %s93
      %p99 = scmp.eq.s32.totalorder %s16, 0
      %p100 = por %p98, %p99
      %p101 = scmp.ne.s32.totalorder %s90, %s93
      %p102 = scmp.eq.s32.totalorder %s21, 1
      %p103 = por %p101, %p102
      %p104 = scmp.ne.s32.totalorder %s93, %s94
      %p105 = scmp.eq.s32.totalorder %s21, 0
      %p106 = por %p104, %p105
      %p107 = scmp.ne.s32.totalorder %s93, %s94
      %p108 = scmp.eq.s32.totalorder %s22, 1
      %p109 = por %p107, %p108
      %p111 = scmp.ne.s32.totalorder %s94, %s110
      %p112 = scmp.eq.s32.totalorder %s22, 0
      %p113 = por %p111, %p112
      %s114 = ssub.s32 %s24, %s31
      %p115 = scmp.eq.s32.totalorder %s114, 0
      %s117 = sadd.s32 %s116, 1
      %s118 = scalar_select %p115, %s116, %s117
      %p121 = pneg %p115
      %p122 = scmp.eq.s32.totalorder %s16, 1
      %p123 = por %p121, %p122
      %p124 = scmp.ne.s32.totalorder %s116, %s119
      %p125 = scmp.eq.s32.totalorder %s16, 0
      %p126 = por %p124, %p125
      %p127 = scmp.ne.s32.totalorder %s116, %s119
      %p128 = scmp.eq.s32.totalorder %s21, 1
      %p129 = por %p127, %p128
      %p130 = scmp.ne.s32.totalorder %s119, %s120
      %p131 = scmp.eq.s32.totalorder %s21, 0
      %p132 = por %p130, %p131
      %p133 = scmp.ne.s32.totalorder %s119, %s120
      %p134 = scmp.eq.s32.totalorder %s22, 1
      %p135 = por %p133, %p134
      %p137 = scmp.ne.s32.totalorder %s120, %s136
      %p138 = scmp.eq.s32.totalorder %s22, 0
      %p139 = por %p137, %p138
      %s140 = ssub.s32 %s24, %s31
      %p141 = scmp.eq.s32.totalorder %s140, 0
      %s143 = sadd.s32 %s142, 1
      %s144 = scalar_select %p141, %s142, %s143
      %p147 = pneg %p141
      %p148 = scmp.eq.s32.totalorder %s16, 1
      %p149 = por %p147, %p148
      %p150 = scmp.ne.s32.totalorder %s142, %s145
      %p151 = scmp.eq.s32.totalorder %s16, 0
      %p152 = por %p150, %p151
      %p153 = scmp.ne.s32.totalorder %s142, %s145
      %p154 = scmp.eq.s32.totalorder %s21, 1
      %p155 = por %p153, %p154
      %p156 = scmp.ne.s32.totalorder %s145, %s146
      %p157 = scmp.eq.s32.totalorder %s21, 0
      %p158 = por %p156, %p157
      %p159 = scmp.ne.s32.totalorder %s145, %s146
      %p160 = scmp.eq.s32.totalorder %s22, 1
      %p161 = por %p159, %p160
      %p163 = scmp.ne.s32.totalorder %s146, %s162
      %p164 = scmp.eq.s32.totalorder %s22, 0
      %p165 = por %p163, %p164
      %s166 = ssub.s32 %s24, %s31
      %p167 = scmp.eq.s32.totalorder %s166, 0
      %s169 = sadd.s32 %s168, 1
      %s170 = scalar_select %p167, %s168, %s169
      %p173 = pneg %p167
      %p174 = scmp.eq.s32.totalorder %s16, 1
      %p175 = por %p173, %p174
      %p176 = scmp.ne.s32.totalorder %s168, %s171
      %p177 = scmp.eq.s32.totalorder %s16, 0
      %p178 = por %p176, %p177
      %p179 = scmp.ne.s32.totalorder %s168, %s171
      %p180 = scmp.eq.s32.totalorder %s21, 1
      %p181 = por %p179, %p180
      %p182 = scmp.ne.s32.totalorder %s171, %s172
      %p183 = scmp.eq.s32.totalorder %s21, 0
      %p184 = por %p182, %p183
      %p185 = scmp.ne.s32.totalorder %s171, %s172
      %p186 = scmp.eq.s32.totalorder %s22, 1
      %p187 = por %p185, %p186
      %p189 = scmp.ne.s32.totalorder %s172, %s188
      %p190 = scmp.eq.s32.totalorder %s22, 0
      %p191 = por %p189, %p190
      %s193 = sadd.s32 %s192, 1
      %p196 = scmp.eq.s32.totalorder %s16, 1
      %p197 = scmp.ne.s32.totalorder %s192, %s194
      %p198 = scmp.eq.s32.totalorder %s16, 0
      %p199 = por %p197, %p198
      %p200 = scmp.ne.s32.totalorder %s192, %s194
      %p201 = scmp.eq.s32.totalorder %s21, 1
      %p202 = por %p200, %p201
      %p203 = scmp.ne.s32.totalorder %s194, %s195
      %p204 = scmp.eq.s32.totalorder %s21, 0
      %p205 = por %p203, %p204
      %p206 = scmp.ne.s32.totalorder %s194, %s195
      %p207 = scmp.eq.s32.totalorder %s22, 1
      %p208 = por %p206, %p207
      %p210 = scmp.ne.s32.totalorder %s195, %s209
      %p211 = scmp.eq.s32.totalorder %s22, 0
      %p212 = por %p210, %p211
      %s213 = ssub.s32 %s23, %s35
      %p214 = scmp.eq.s32.totalorder %s213, 0
      %s216 = sadd.s32 %s215, 1
      %s217 = scalar_select %p214, %s215, %s216
      %p220 = pneg %p214
      %p221 = scmp.eq.s32.totalorder %s16, 1
      %p222 = por %p220, %p221
      %p223 = scmp.ne.s32.totalorder %s215, %s218
      %p224 = scmp.eq.s32.totalorder %s16, 0
      %p225 = por %p223, %p224
      %p226 = scmp.ne.s32.totalorder %s215, %s218
      %p227 = scmp.eq.s32.totalorder %s21, 1
      %p228 = por %p226, %p227
      %p229 = scmp.ne.s32.totalorder %s218, %s219
      %p230 = scmp.eq.s32.totalorder %s21, 0
      %p231 = por %p229, %p230
      %p232 = scmp.ne.s32.totalorder %s218, %s219
      %p233 = scmp.eq.s32.totalorder %s22, 1
      %p234 = por %p232, %p233
      %p236 = scmp.ne.s32.totalorder %s219, %s235
      %p237 = scmp.eq.s32.totalorder %s22, 0
      %p238 = por %p236, %p237
      %p239 = scmp.le.s32.totalorder 1, %s16
      %p240 = scmp.lt.s32.totalorder %s16, 3
      %p241 = pnand %p239, %p240
      %p242 = pneg %p241
      // Predicated region
      $region9: #{tpu_custom_call.1} parent=5 // pred_check
        _
      $region10: #{tpu_custom_call.1} parent=5 // pred_check_branch
        %244 = sbr.rel (%p241) target = $region12
      $region11: #{tpu_custom_call.1} parent=5 // pred_region
        %s245 = ssub.s32 %s16, 1
        // Predicated region
        $region13: #{tpu_custom_call.1} parent=11 // pred_check
          %p246 = pneg %p80
        $region14: #{tpu_custom_call.1} parent=11 // pred_check_branch
          %248 = sbr.rel (%p246) target = $region16
        $region15: #{tpu_custom_call.1} parent=11 // pred_region
          %p249 = scmp.lt.s32.totalorder %s26, 0
          %s250 = scalar_select %p249, %s26, 0
          %s251 = smul.addr %s250, 8
          %s252 = scalar_lea.vmem %s1, %s251
        $region16: #{tpu_custom_call.1} parent=11 // pred_fallthru
          _
        // Predicated region
        $region17: #{tpu_custom_call.1} parent=11 // pred_check
          %p253 = pneg %p106
        $region18: #{tpu_custom_call.1} parent=11 // pred_check_branch
          %255 = sbr.rel (%p253) target = $region20
        $region19: #{tpu_custom_call.1} parent=11 // pred_region
          %p256 = scmp.lt.s32.totalorder %s26, 0
          %s257 = scalar_select %p256, %s26, 0
          %s258 = smul.addr %s257, 8
          %s259 = scalar_lea.vmem %s2, %s258
        $region20: #{tpu_custom_call.1} parent=11 // pred_fallthru
          _
        // Predicated region
        $region21: #{tpu_custom_call.1} parent=11 // pred_check
          %p260 = pneg %p132
        $region22: #{tpu_custom_call.1} parent=11 // pred_check_branch
          %262 = sbr.rel (%p260) target = $region24
        $region23: #{tpu_custom_call.1} parent=11 // pred_region
          %s263 = smul.u32 8, %s26
          %p264 = scmp.lt.s32.totalorder %s263, 7
          %s265 = scalar_select %p264, %s263, 7
          %s266 = smul.addr %s265, 8
          %s267 = scalar_lea.vmem %s3, %s266
          %s268 = smul.u32 8, %s26
        $region24: #{tpu_custom_call.1} parent=11 // pred_fallthru
          _
        // Predicated region
        $region25: #{tpu_custom_call.1} parent=11 // pred_check
          %p269 = pneg %p158
        $region26: #{tpu_custom_call.1} parent=11 // pred_check_branch
          %271 = sbr.rel (%p269) target = $region28
        $region27: #{tpu_custom_call.1} parent=11 // pred_region
          %p272 = scmp.lt.s32.totalorder %s26, 0
          %s273 = scalar_select %p272, %s26, 0
          %s274 = scalar_lea.vmem %s4, %s273
        $region28: #{tpu_custom_call.1} parent=11 // pred_fallthru
          _
        // Predicated region
        $region29: #{tpu_custom_call.1} parent=11 // pred_check
          %p275 = pneg %p184
        $region30: #{tpu_custom_call.1} parent=11 // pred_check_branch
          %277 = sbr.rel (%p275) target = $region32
        $region31: #{tpu_custom_call.1} parent=11 // pred_region
          %p278 = scmp.lt.s32.totalorder %s26, 0
          %s279 = scalar_select %p278, %s26, 0
          %s280 = scalar_lea.vmem %s5, %s279
        $region32: #{tpu_custom_call.1} parent=11 // pred_fallthru
          _
        // Predicated region
        $region33: #{tpu_custom_call.1} parent=11 // pred_check
          %p281 = pneg %p205
        $region34: #{tpu_custom_call.1} parent=11 // pred_check_branch
          %283 = sbr.rel (%p281) target = $region36
        $region35: #{tpu_custom_call.1} parent=11 // pred_region
          _
        $region36: #{tpu_custom_call.1} parent=11 // pred_fallthru
          _
      $region12: #{tpu_custom_call.1} parent=5 // pred_fallthru
        _
      %p284 = scmp.lt.s32.totalorder %s16, 2
      // Predicated region
      $region37: #{tpu_custom_call.1} parent=5 // pred_check
        %p285 = pneg %p284
      $region38: #{tpu_custom_call.1} parent=5 // pred_check_branch
        %287 = sbr.rel (%p285) target = $region40
      $region39: #{tpu_custom_call.1} parent=5 // pred_region
        // Predicated region
        $region41: #{tpu_custom_call.1} parent=39 // pred_check
          %p288 = pneg %p48
        $region42: #{tpu_custom_call.1} parent=39 // pred_check_branch
          %290 = sbr.rel (%p288) target = $region44
        $region43: #{tpu_custom_call.1} parent=39 // pred_region
          %p291 = scmp.lt.s32.totalorder %s23, 1
          %s292 = scalar_select %p291, %s23, 1
          %s293 = smul.addr %s292, 8
          %s294 = scalar_lea.vmem %s0, %s293
        $region44: #{tpu_custom_call.1} parent=39 // pred_fallthru
          _
      $region40: #{tpu_custom_call.1} parent=5 // pred_fallthru
        _
      %p295 = scmp.le.s32.totalorder 1, %s16
      %p296 = scmp.lt.s32.totalorder %s16, 3
      %p297 = pnand %p295, %p296
      %p298 = pneg %p297
      // Predicated region
      $region45: #{tpu_custom_call.1} parent=5 // pred_check
        _
      $region46: #{tpu_custom_call.1} parent=5 // pred_check_branch
        %300 = sbr.rel (%p297) target = $region48
      $region47: #{tpu_custom_call.1} parent=5 // pred_region
        %s301 = ssub.s32 %s16, 1
        %p302 = scmp.lt.s32.totalorder %s25, 1
        %s303 = scalar_select %p302, %s25, 1
        %s304 = smul.addr %s303, 8
        %s305 = scalar_lea.vmem %s0, %s304
        %p306 = pneg %p54
        %p307 = pneg %p51
        %p308 = scmp.lt.s32.totalorder %s26, 0
        %s309 = scalar_select %p308, %s26, 0
        %s310 = smul.addr %s309, 8
        %s311 = scalar_lea.vmem %s1, %s310
        %p312 = pneg %p80
        %p313 = pneg %p77
        %p314 = scmp.lt.s32.totalorder %s26, 0
        %s315 = scalar_select %p314, %s26, 0
        %s316 = smul.addr %s315, 8
        %s317 = scalar_lea.vmem %s2, %s316
        %p318 = pneg %p106
        %p319 = pneg %p103
        %s320 = smul.u32 8, %s26
        %p321 = scmp.lt.s32.totalorder %s320, 7
        %s322 = scalar_select %p321, %s320, 7
        %s323 = smul.addr %s322, 8
        %s324 = scalar_lea.vmem %s3, %s323
        %p325 = pneg %p132
        %p326 = pneg %p129
        %p327 = scmp.lt.s32.totalorder %s26, 0
        %s328 = scalar_select %p327, %s26, 0
        %s329 = scalar_lea.vmem %s4, %s328
        %p330 = pneg %p158
        %p331 = pneg %p155
        %p332 = scmp.lt.s32.totalorder %s26, 0
        %s333 = scalar_select %p332, %s26, 0
        %s334 = scalar_lea.vmem %s5, %s333
        %p335 = pneg %p184
        %p336 = pneg %p181
        %p337 = pneg %p205
        %p338 = pneg %p202
        %p339 = pneg %p231
        %p340 = pneg %p228
        %s341 = sand.u32 %s218, 1
        %s342 = scalar_lea.sflag [#allocation3], %s341
        %s343 = sand.u32 %s218, 1
        %s344 = smul.addr %s343, 8
        %s345 = scalar_lea.vmem [#allocation2], %s344
        %p346 = scmp.lt.s32.totalorder %s25, 1
        %s347 = scalar_select %p346, %s25, 1
        %s348 = smul.addr %s347, 8
        %s349 = scalar_lea.vmem %s0, %s348
        %p350 = scmp.lt.s32.totalorder %s26, 0
        %s351 = scalar_select %p350, %s26, 0
        %s352 = smul.addr %s351, 8
        %s353 = scalar_lea.vmem %s1, %s352
        %p354 = scmp.lt.s32.totalorder %s26, 0
        %s355 = scalar_select %p354, %s26, 0
        %s356 = smul.addr %s355, 8
        %s357 = scalar_lea.vmem %s2, %s356
        %s358 = smul.u32 8, %s26
        %p359 = scmp.lt.s32.totalorder %s358, 7
        %s360 = scalar_select %p359, %s358, 7
        %s361 = smul.addr %s360, 8
        %s362 = scalar_lea.vmem %s3, %s361
        %s363 = smul.u32 8, %s26
        %p364 = scmp.lt.s32.totalorder %s26, 0
        %s365 = scalar_select %p364, %s26, 0
        %s366 = scalar_lea.vmem %s4, %s365
        %p367 = scmp.lt.s32.totalorder %s26, 0
        %s368 = scalar_select %p367, %s26, 0
        %s369 = scalar_lea.vmem %s5, %s368
        %v370 = vld [vmem:[%s349] sm:$0xff]
        %v371 = vld [vmem:[%s353] sm:$0xff]
        %v372 = vld [vmem:[%s353 + $0x8] sm:$0xff]
        %v373 = vld [vmem:[%s353 + $0x10] sm:$0xff]
        %v374 = vld [vmem:[%s353 + $0x18] sm:$0xff]
        %v375 = vld [vmem:[%s353 + $0x20] sm:$0xff]
        %v376 = vld [vmem:[%s353 + $0x28] sm:$0xff]
        %v377 = vld [vmem:[%s353 + $0x30] sm:$0xff]
        %v378 = vld [vmem:[%s353 + $0x38] sm:$0xff]
        %v379 = vld [vmem:[%s353 + $0x40] sm:$0xff]
        %v380 = vld [vmem:[%s353 + $0x48] sm:$0xff]
        %v381 = vld [vmem:[%s353 + $0x50] sm:$0xff]
        %v382 = vld [vmem:[%s353 + $0x58] sm:$0xff]
        %v383 = vld [vmem:[%s353 + $0x60] sm:$0xff]
        %v384 = vld [vmem:[%s353 + $0x68] sm:$0xff]
        %v385 = vld [vmem:[%s353 + $0x70] sm:$0xff]
        %v386 = vld [vmem:[%s353 + $0x78] sm:$0xff]
        %v387 = vld [vmem:[%s366] sm:$0x1]
        %v389 = vperm.slane %v387, 0
        %391 = vmatpush.msra.mxu0 %v386
        %392 = vmatpush.msra.mxu0 %v385
        %393 = vmatpush.msra.mxu0 %v384
        %394 = vmatpush.msra.mxu0 %v383
        %395 = vmatpush.msra.mxu0 %v382
        %396 = vmatpush.msra.mxu0 %v381
        %397 = vmatpush.msra.mxu0 %v380
        %398 = vmatpush.msra.mxu0 %v379
        %399 = vmatpush.msra.mxu0 %v378
        %400 = vmatpush.msra.mxu0 %v377
        %401 = vmatpush.msra.mxu0 %v376
        %402 = vmatpush.msra.mxu0 %v375
        %403 = vmatpush.msra.mxu0 %v374
        %404 = vmatpush.msra.mxu0 %v373
        %405 = vmatpush.msra.mxu0 %v372
        %406 = vmatpush.msra.mxu0 %v371
        %407 = vmatmul.f32.gmra.mxu0 %v370
        %v408 = vpop.f32.mrf.mxu0
        %v409 = vadd.f32 %v389, %v408
        %410 = vdwg.mxu0
        %v411 = vld [vmem:[%s357] sm:$0xff]
        %v412 = vld [vmem:[%s357 + $0x8] sm:$0xff]
        %v413 = vld [vmem:[%s357 + $0x10] sm:$0xff]
        %v414 = vld [vmem:[%s357 + $0x18] sm:$0xff]
        %v415 = vld [vmem:[%s357 + $0x20] sm:$0xff]
        %v416 = vld [vmem:[%s357 + $0x28] sm:$0xff]
        %v417 = vld [vmem:[%s357 + $0x30] sm:$0xff]
        %v418 = vld [vmem:[%s357 + $0x38] sm:$0xff]
        %v419 = vld [vmem:[%s357 + $0x40] sm:$0xff]
        %v420 = vld [vmem:[%s357 + $0x48] sm:$0xff]
        %v421 = vld [vmem:[%s357 + $0x50] sm:$0xff]
        %v422 = vld [vmem:[%s357 + $0x58] sm:$0xff]
        %v423 = vld [vmem:[%s357 + $0x60] sm:$0xff]
        %v424 = vld [vmem:[%s357 + $0x68] sm:$0xff]
        %v425 = vld [vmem:[%s357 + $0x70] sm:$0xff]
        %v426 = vld [vmem:[%s357 + $0x78] sm:$0xff]
        %v427 = vld [vmem:[%s369] sm:$0x1]
        %v429 = vperm.slane %v427, 0
        %431 = vmatpush.msra.mxu0 %v426
        %432 = vmatpush.msra.mxu0 %v425
        %433 = vmatpush.msra.mxu0 %v424
        %434 = vmatpush.msra.mxu0 %v423
        %435 = vmatpush.msra.mxu0 %v422
        %436 = vmatpush.msra.mxu0 %v421
        %437 = vmatpush.msra.mxu0 %v420
        %438 = vmatpush.msra.mxu0 %v419
        %439 = vmatpush.msra.mxu0 %v418
        %440 = vmatpush.msra.mxu0 %v417
        %441 = vmatpush.msra.mxu0 %v416
        %442 = vmatpush.msra.mxu0 %v415
        %443 = vmatpush.msra.mxu0 %v414
        %444 = vmatpush.msra.mxu0 %v413
        %445 = vmatpush.msra.mxu0 %v412
        %446 = vmatpush.msra.mxu0 %v411
        %447 = vmatmul.f32.gmra.mxu0 %v370
        %v448 = vpop.f32.mrf.mxu0
        %v449 = vadd.f32 %v429, %v448
        %450 = vdwg.mxu0
        %v451 = vxor.u32 %v409, 2147483648
        %v452 = vmul.f32 %v451, 1.442695
        %v453 = vpow.pop %v452
        %v454 = vadd.f32 %v453, 1.0
        %v455 = vrcp.pop %v454
        %v456 = vmul.f32 %v454, %v455
        %v457 = vsub.f32 1.0, %v456
        %v458 = vmul.f32 %v455, %v457
        %v459 = vadd.f32 %v455, %v458
        %vm460 = vweird.f32 %v454
        %vm461 = vweird.f32 %v455
        %vm462 = vmor %vm460, %vm461
        %v463 = vsel %vm462, %v455, %v459
        %v464 = vand.u32 2147483647, %v454
        %vm465 = vcmp.eq.f32.partialorder %v464, 8.507059e+37
        %v466 = vand.u32 %v454, 2147483648
        %v467 = vor.u32 1.1754944e-38, %v466
        %v468 = vsel %vm465, %v467, %v463
        %v469 = vmul.f32 1.0, %v468
        %v470 = vmul.f32 %v409, %v469
        %v471 = vmul.f32 %v470, %v449
        %v472 = vld [vmem:[%s362] sm:$0xff]
        %v473 = vld [vmem:[%s362 + $0x8] sm:$0xff]
        %v474 = vld [vmem:[%s362 + $0x10] sm:$0xff]
        %v475 = vld [vmem:[%s362 + $0x18] sm:$0xff]
        %v476 = vld [vmem:[%s362 + $0x20] sm:$0xff]
        %v477 = vld [vmem:[%s362 + $0x28] sm:$0xff]
        %v478 = vld [vmem:[%s362 + $0x30] sm:$0xff]
        %v479 = vld [vmem:[%s362 + $0x38] sm:$0xff]
        %vm480 = vcmask 523264
        %v482 = vsel %vm480, %v471, 0
        %484 = vmatpush.msra.mxu0 0.0
        %485 = vmatpush.msra.mxu0 0.0
        %486 = vmatpush.msra.mxu0 0.0
        %487 = vmatpush.msra.mxu0 0.0
        %488 = vmatpush.msra.mxu0 0.0
        %489 = vmatpush.msra.mxu0 0.0
        %490 = vmatpush.msra.mxu0 0.0
        %491 = vmatpush.msra.mxu0 0.0
        %492 = vmatpush.msra.mxu0 %v479
        %493 = vmatpush.msra.mxu0 %v478
        %494 = vmatpush.msra.mxu0 %v477
        %495 = vmatpush.msra.mxu0 %v476
        %496 = vmatpush.msra.mxu0 %v475
        %497 = vmatpush.msra.mxu0 %v474
        %498 = vmatpush.msra.mxu0 %v473
        %499 = vmatpush.msra.mxu0 %v472
        %500 = vmatmul.f32.gmra.mxu0 %v482
        %v501 = vpop.f32.mrf.mxu0
        %v502 = vadd.f32 0.0, %v501
        %503 = vdwg.mxu0
        %p504 = scmp.eq.s32.totalorder %s26, 0
        // Predicated region
        $region49: #{tpu_custom_call.1} parent=47 // pred_check
          %p505 = pneg %p504
        $region50: #{tpu_custom_call.1} parent=47 // pred_check_branch
          %507 = sbr.rel (%p505) target = $region52
        $region51: #{tpu_custom_call.1} parent=47 // pred_region
          %v508 = vld [vmem:[%s6] sm:$0x1]
          %v510 = vperm.slane %v508, 0
          %v512 = vadd.f32 %v510, %v502
          %513 = vst [vmem:[%s345] sm:$0xff] %v512
        $region52: #{tpu_custom_call.1} parent=47 // pred_fallthru
          _
        %p514 = scmp.ne.s32.totalorder %s26, 0
        // Predicated region
        $region53: #{tpu_custom_call.1} parent=47 // pred_check
          %p515 = pneg %p514
        $region54: #{tpu_custom_call.1} parent=47 // pred_check_branch
          %517 = sbr.rel (%p515) target = $region56
        $region55: #{tpu_custom_call.1} parent=47 // pred_region
          %v518 = vld [vmem:[%s345] sm:$0xff]
          %v519 = vadd.f32 %v518, %v502
          %520 = vst [vmem:[%s345] sm:$0xff] %v519
        $region56: #{tpu_custom_call.1} parent=47 // pred_fallthru
          _
        %s521 = sand.u32 %s218, 1
        %s522 = scalar_lea.sflag [#allocation3], %s521
        %s523 = sand.u32 %s218, 1
        %s524 = smul.addr %s523, 8
        %s525 = scalar_lea.vmem [#allocation2], %s524
        // Predicated region
        $region57: #{tpu_custom_call.1} parent=47 // pred_check
          %p526 = pneg %p228
        $region58: #{tpu_custom_call.1} parent=47 // pred_check_branch
          %528 = sbr.rel (%p526) target = $region60
        $region59: #{tpu_custom_call.1} parent=47 // pred_region
          %530 = vsyncadd %s522, 0
          %s531 = smul.addr %s25, 8
          %s532 = scalar_lea.hbm %s7, %s531
          %s534 = sshll.u32 %s525, 4
          %s535 = int_to_ptr.vmem [resolvable:$true] %s534
          %s536 = sshll.u32 %s532, 4
          %s537 = int_to_ptr.hbm [resolvable:$true] %s536
          %539 = dma.vmem_to_hbm [thread:$0]  %s535, 128, %s537, %s522
        $region60: #{tpu_custom_call.1} parent=47 // pred_fallthru
          _
      $region48: #{tpu_custom_call.1} parent=5 // pred_fallthru
        _
      %p540 = scmp.le.s32.totalorder 2, %s16
      // Predicated region
      $region61: #{tpu_custom_call.1} parent=5 // pred_check
        %p541 = pneg %p540
      $region62: #{tpu_custom_call.1} parent=5 // pred_check_branch
        %543 = sbr.rel (%p541) target = $region64
      $region63: #{tpu_custom_call.1} parent=5 // pred_region
        %s544 = ssub.s32 %s16, 2
        // Predicated region
        $region65: #{tpu_custom_call.1} parent=63 // pred_check
          %p545 = pneg %p234
        $region66: #{tpu_custom_call.1} parent=63 // pred_check_branch
          %547 = sbr.rel (%p545) target = $region68
        $region67: #{tpu_custom_call.1} parent=63 // pred_region
          %s548 = sand.u32 %s219, 1
          %s549 = scalar_lea.sflag [#allocation3], %s548
          %s550 = sand.u32 %s219, 1
          %s551 = smul.addr %s550, 8
          %s552 = scalar_lea.vmem [#allocation2], %s551
          %554 = dma.done %s549, 128
        $region68: #{tpu_custom_call.1} parent=63 // pred_fallthru
          _
      $region64: #{tpu_custom_call.1} parent=5 // pred_fallthru
        _
    $region6: #{tpu_custom_call.1} parent=1 // loop_footer
      %s20 = sadd.s32 1, %s16
    $region7: #{tpu_custom_call.1} parent=1 // loop_footer_branch
      %15 = sbr.rel target = $region3
    $region8: #{tpu_custom_call.1} parent=1 // loop_exit
      _
    %555 = vsyncpa [#allocation3], 1
    %s556 = scalar_lea.sflag [#allocation3], 1
    %557 = vsyncpa %s556, 1

</llo_original>
